<compile_context>
chip_gen: v6e
topology: v6e:2x2x1
jax: 0.10.0
libtpu: 0.0.40
codegen_flags: <defaults>
</compile_context>

<pallas_src>
import functools

import jax
import jax.numpy as jnp
from jax import lax
from jax.experimental import pallas as pl
from jax.experimental.pallas import tpu as pltpu


def _round_up(n, m):
    return ((n + m - 1) // m) * m


def ann_kernel(x_ref,
               w1_ref, b1_ref,
               w2_ref, b2_ref,
               w3_ref, b3_ref,
               w4_ref, b4_ref,
               o_ref, *, chunk):
    """One batch tile.

    x_ref : (tile_b, D_in)   input dtype (f32 as supplied; cast per-chunk in kernel)
    wK_ref: (out_f, in_f)    MXU compute dtype (bf16 by default), hidden padded to Hp
    bK_ref: (out_f, 1)       elementwise dtype (bf16 on v6e/v7x); b4 stays f32
    o_ref : (D_out, tile_b)  f32, lane-dense (batch on the 128-wide lane axis)
    """
    # Hoist the VMEM-resident weight/bias loads out of the chunk loop.
    w1 = w1_ref[...]
    b1 = b1_ref[...]
    w2 = w2_ref[...]
    b2 = b2_ref[...]
    w3 = w3_ref[...]
    b3 = b3_ref[...]
    w4 = w4_ref[...]
    b4 = b4_ref[...]
    mx_dtype = w1.dtype
    act_dtype = b1.dtype

    tile_b = x_ref.shape[0]
    num_chunks = tile_b // chunk

    # Fully-unrolled chunk loop (equivalent to lax.fori_loop(..., unroll=True),
    # with static lane offsets): keeps the (Hp, chunk) intermediates in vregs
    # while the big DMA tile amortizes per-grid-step overhead.
    for c in range(num_chunks):
        lo, hi = c * chunk, (c + 1) * chunk
        xc = x_ref[lo:hi, :].astype(mx_dtype)                           # (chunk, D_in)

        # fc1 (transpose folded into the contraction) -> dropout(id) -> relu
        h = lax.dot_general(w1, xc, (((1,), (1,)), ((), ())),
                            preferred_element_type=jnp.float32)         # (Hp, chunk)
        h = jnp.maximum(h.astype(act_dtype) + b1, 0).astype(mx_dtype)

        # fc2 -> relu -> dropout(id)
        h = jnp.dot(w2, h, preferred_element_type=jnp.float32)
        h = jnp.maximum(h.astype(act_dtype) + b2, 0).astype(mx_dtype)

        # fc3 -> relu -> dropout(id)
        h = jnp.dot(w3, h, preferred_element_type=jnp.float32)
        h = jnp.maximum(h.astype(act_dtype) + b3, 0).astype(mx_dtype)

        # fc4 (no activation); final bias-add in f32
        out = jnp.dot(w4, h, preferred_element_type=jnp.float32) + b4   # (D_out, chunk)
        o_ref[:, lo:hi] = out.astype(o_ref.dtype)


def ann_forward(x, params, *, tile_b=2048, chunk=256,
                use_bf16=True, bf16_elementwise=True):
    """x: (B, input_dim) float32 -> (B, output_dim) float32 (eval-mode forward)."""
    B, D_in = x.shape
    H = params["w1"].shape[1]
    D_out = params["w4"].shape[1]

    mx_dtype = jnp.bfloat16 if use_bf16 else jnp.float32
    # bf16 bias-add/ReLU for v6e/v7x (packed-bf16 VALU); set False on v5e.
    act_dtype = jnp.bfloat16 if (use_bf16 and bf16_elementwise) else jnp.float32

    # --- Tiling: chunk-aligned, large tile; prefer an even tile count (>=2) so the
    # "parallel" grid axis splits evenly across v7x's two TensorCores.
    chunk = max(128, _round_up(chunk, 128))
    tile_b = max(chunk, _round_up(min(tile_b, _round_up(B, chunk)), chunk))
    num_tiles = -(-B // tile_b)
    if num_tiles % 2 == 1 and B > chunk:
        half = tile_b // 2
        if half >= chunk and half % chunk == 0 and (-(-B // half)) % 2 == 0:
            tile_b = half
            num_tiles = -(-B // tile_b)
    B_pad = num_tiles * tile_b
    assert tile_b % chunk == 0

    # x streams directly in its natural (B, D_in) f32 layout -- no separate
    # wrapper-side transpose/cast pass over HBM (it is folded into the kernel).
    xp = x if B_pad == B else jnp.pad(x, ((0, B_pad - B), (0, 0)))

    # Hidden dim zero-padded to a sublane-friendly multiple of 16 (50 -> 64).
    # Padded units get zero weights and zero biases -> contribute nothing.
    Hp = _round_up(H, 16)

    def pad_w(w_t, rows, cols):          # w_t: (out_features, in_features)
        return jnp.pad(w_t, ((0, rows - w_t.shape[0]),
                             (0, cols - w_t.shape[1]))).astype(mx_dtype)

    def pad_b(b, rows, dtype):
        b = b.reshape(-1, 1)
        return jnp.pad(b, ((0, rows - b.shape[0]), (0, 0))).astype(dtype)

    w1 = pad_w(params["w1"].T, Hp, D_in)
    w2 = pad_w(params["w2"].T, Hp, Hp)
    w3 = pad_w(params["w3"].T, Hp, Hp)
    w4 = pad_w(params["w4"].T, D_out, Hp)
    b1 = pad_b(params["b1"], Hp, act_dtype)
    b2 = pad_b(params["b2"], Hp, act_dtype)
    b3 = pad_b(params["b3"], Hp, act_dtype)
    b4 = pad_b(params["b4"], D_out, jnp.float32)     # final bias-add stays f32

    # Constant-index full blocks: weights/biases stay VMEM-resident across the grid.
    resident = lambda shape: pl.BlockSpec(shape, lambda i: (0, 0))

    out_t = pl.pallas_call(
        functools.partial(ann_kernel, chunk=chunk),
        out_shape=jax.ShapeDtypeStruct((D_out, B_pad), jnp.float32),
        grid_spec=pltpu.PrefetchScalarGridSpec(
            num_scalar_prefetch=0,
            grid=(num_tiles,),
            in_specs=[
                pl.BlockSpec((tile_b, D_in), lambda i: (i, 0)),   # streamed x tile
                resident((Hp, D_in)),  resident((Hp, 1)),         # fc1
                resident((Hp, Hp)),    resident((Hp, 1)),         # fc2
                resident((Hp, Hp)),    resident((Hp, 1)),         # fc3
                resident((D_out, Hp)), resident((D_out, 1)),      # fc4
            ],
            out_specs=pl.BlockSpec((D_out, tile_b), lambda i: (0, i)),
        ),
        compiler_params=pltpu.CompilerParams(
            dimension_semantics=("parallel",)),   # batch tiles shard across TCs (v7x)
    )(xp, w1, b1, w2, b2, w3, b3, w4, b4)

    # Back to (B, D_out), dropping the batch padding.
    return out_t[:, :B].T


def init_params(key, input_dim, hidden_dim, output_dim):
    """Deterministic PyTorch-Linear-style init: U(-1/sqrt(fan_in), 1/sqrt(fan_in))."""
    dims = [(input_dim, hidden_dim),
            (hidden_dim, hidden_dim),
            (hidden_dim, hidden_dim),
            (hidden_dim, output_dim)]
    params = {}
    for idx, (fan_in, fan_out) in enumerate(dims, start=1):
        key, kw, kb = jax.random.split(key, 3)
        bound = 1.0 / jnp.sqrt(jnp.float32(fan_in))
        params[f"w{idx}"] = jax.random.uniform(
            kw, (fan_in, fan_out), jnp.float32, -bound, bound)
        params[f"b{idx}"] = jax.random.uniform(
            kb, (1, fan_out), jnp.float32, -bound, bound)
    return params


def ann_reference(x, params):
    """Plain-JAX f32 reference (dropout = identity in eval mode)."""
    h = jnp.maximum(x @ params["w1"] + params["b1"], 0.0)
    h = jnp.maximum(h @ params["w2"] + params["b2"], 0.0)
    h = jnp.maximum(h @ params["w3"] + params["b3"], 0.0)
    return h @ params["w4"] + params["b4"]


if __name__ == "__main__":
    input_dim, hidden_dim, output_dim = 32, 50, 1

    key = jax.random.PRNGKey(0)
    key, kx_small, kx_mid, kx_big = jax.random.split(key, 4)
    params = init_params(key, input_dim, hidden_dim, output_dim)

    # 1) Small batch (B=16), f32 path: single padded tile, strict check.
    x_small = jax.random.normal(kx_small, (16, input_dim), jnp.float32)
    out_small = jax.block_until_ready(
        ann_forward(x_small, params, use_bf16=False, bf16_elementwise=False))
    ref_small = ann_reference(x_small, params)
    assert out_small.shape == (16, output_dim)
    assert jnp.allclose(out_small, ref_small, atol=1e-4, rtol=1e-4), \
        "f32 small-batch mismatch vs reference"

    # 2) Ragged batch (B=300), f32 path: exercises batch padding + even-tile split.
    x_mid = jax.random.normal(kx_mid, (300, input_dim), jnp.float32)
    out_mid = jax.block_until_ready(
        ann_forward(x_mid, params, use_bf16=False, bf16_elementwise=False))
    ref_mid = ann_reference(x_mid, params)
    assert out_mid.shape == (300, output_dim)
    assert jnp.allclose(out_mid, ref_mid, atol=1e-4, rtol=1e-4), \
        "f32 ragged-batch mismatch vs reference"

    # 3) Larger batch (B=1024), f32 path: 2 tiles x 2 chunks -> tests the tiled
    #    grid, the even split across TCs, and the inner chunk loop.
    x_big = jax.random.normal(kx_big, (1024, input_dim), jnp.float32)
    out_big_f32 = jax.block_until_ready(
        ann_forward(x_big, params, use_bf16=False, bf16_elementwise=False))
    ref_big = ann_reference(x_big, params)
    assert out_big_f32.shape == (1024, output_dim)
    assert jnp.allclose(out_big_f32, ref_big, atol=1e-4, rtol=1e-4), \
        "f32 tiled mismatch vs reference"

    # 4) Default performance path: bf16 MXU operands + bf16 elementwise,
    #    f32 accumulation (loose check).
    out_big_bf16 = jax.block_until_ready(ann_forward(x_big, params))
    assert jnp.allclose(out_big_bf16, ref_big, atol=5e-2, rtol=5e-2), \
        "bf16 tiled mismatch vs reference"

    print("KERNEL_OK")
</pallas_src>

<mosaic_0001>
module attributes {stable_mosaic.version = 11 : i64} {
  func.func @ann_kernel(%arg0: i32, %arg1: memref<256x32xf32, #tpu.memory_space<vmem>>, %arg2: memref<64x32xf32, #tpu.memory_space<vmem>>, %arg3: memref<64x1xf32, #tpu.memory_space<vmem>>, %arg4: memref<64x64xf32, #tpu.memory_space<vmem>>, %arg5: memref<64x1xf32, #tpu.memory_space<vmem>>, %arg6: memref<64x64xf32, #tpu.memory_space<vmem>>, %arg7: memref<64x1xf32, #tpu.memory_space<vmem>>, %arg8: memref<1x64xf32, #tpu.memory_space<vmem>>, %arg9: memref<1x1xf32, #tpu.memory_space<vmem>>, %arg10: memref<1x256xf32, #tpu.memory_space<vmem>>) attributes {dimension_semantics = [#tpu.dimension_semantics<parallel>], iteration_bounds = array<i64: 1>, scalar_prefetch = 0 : i64, scratch_operands = 0 : i64, tpu.core_type = #tpu.core_type<tc>, window_params = [{transform_indices = @transform_0, window_bounds = array<i64: 256, 32>}, {pipeline_mode = #tpu.pipeline_mode<synchronous>, transform_indices = @transform_1, window_bounds = array<i64: 64, 32>}, {pipeline_mode = #tpu.pipeline_mode<synchronous>, transform_indices = @transform_2, window_bounds = array<i64: 64, 1>}, {pipeline_mode = #tpu.pipeline_mode<synchronous>, transform_indices = @transform_3, window_bounds = array<i64: 64, 64>}, {pipeline_mode = #tpu.pipeline_mode<synchronous>, transform_indices = @transform_4, window_bounds = array<i64: 64, 1>}, {pipeline_mode = #tpu.pipeline_mode<synchronous>, transform_indices = @transform_5, window_bounds = array<i64: 64, 64>}, {pipeline_mode = #tpu.pipeline_mode<synchronous>, transform_indices = @transform_6, window_bounds = array<i64: 64, 1>}, {pipeline_mode = #tpu.pipeline_mode<synchronous>, transform_indices = @transform_7, window_bounds = array<i64: 1, 64>}, {pipeline_mode = #tpu.pipeline_mode<synchronous>, transform_indices = @transform_8, window_bounds = array<i64: 1, 1>}, {transform_indices = @transform_9, window_bounds = array<i64: 1, 256>}]} {
    %c0 = arith.constant 0 : index
    %c0_0 = arith.constant 0 : index
    %0 = vector.load %arg2[%c0, %c0_0] : memref<64x32xf32, #tpu.memory_space<vmem>>, vector<64x32xf32>
    %c0_1 = arith.constant 0 : index
    %c0_2 = arith.constant 0 : index
    %1 = vector.load %arg3[%c0_1, %c0_2] : memref<64x1xf32, #tpu.memory_space<vmem>>, vector<64x1xf32>
    %c0_3 = arith.constant 0 : index
    %c0_4 = arith.constant 0 : index
    %2 = vector.load %arg4[%c0_3, %c0_4] : memref<64x64xf32, #tpu.memory_space<vmem>>, vector<64x64xf32>
    %c0_5 = arith.constant 0 : index
    %c0_6 = arith.constant 0 : index
    %3 = vector.load %arg5[%c0_5, %c0_6] : memref<64x1xf32, #tpu.memory_space<vmem>>, vector<64x1xf32>
    %c0_7 = arith.constant 0 : index
    %c0_8 = arith.constant 0 : index
    %4 = vector.load %arg6[%c0_7, %c0_8] : memref<64x64xf32, #tpu.memory_space<vmem>>, vector<64x64xf32>
    %c0_9 = arith.constant 0 : index
    %c0_10 = arith.constant 0 : index
    %5 = vector.load %arg7[%c0_9, %c0_10] : memref<64x1xf32, #tpu.memory_space<vmem>>, vector<64x1xf32>
    %c0_11 = arith.constant 0 : index
    %c0_12 = arith.constant 0 : index
    %6 = vector.load %arg8[%c0_11, %c0_12] : memref<1x64xf32, #tpu.memory_space<vmem>>, vector<1x64xf32>
    %c0_13 = arith.constant 0 : index
    %c0_14 = arith.constant 0 : index
    %7 = vector.load %arg9[%c0_13, %c0_14] : memref<1x1xf32, #tpu.memory_space<vmem>>, vector<1x1xf32>
    %c0_15 = arith.constant 0 : index
    %c0_16 = arith.constant 0 : index
    %8 = vector.load %arg1[%c0_15, %c0_16] : memref<256x32xf32, #tpu.memory_space<vmem>>, vector<256x32xf32>
    %cst = arith.constant dense<0.000000e+00> : vector<64x256xf32>
    %9 = tpu.matmul %0, %8, %cst {dimension_numbers = #tpu.dot_dimension_numbers<[1], [1], [0], [0], [0, 0, 1, 0], [], []>} : vector<64x32xf32>, vector<256x32xf32>, vector<64x256xf32> -> vector<64x256xf32>
    %10 = vector.broadcast %1 : vector<64x1xf32> to vector<64x256xf32>
    %11 = arith.addf %9, %10 : vector<64x256xf32>
    %cst_17 = arith.constant 0.000000e+00 : f32
    %12 = vector.broadcast %cst_17 : f32 to vector<64x256xf32>
    %13 = arith.maximumf %11, %12 : vector<64x256xf32>
    %cst_18 = arith.constant dense<0.000000e+00> : vector<64x256xf32>
    %14 = tpu.matmul %2, %13, %cst_18 {dimension_numbers = #tpu.dot_dimension_numbers<[1], [0], [0], [1], [0, 0, 1, 1], [], []>} : vector<64x64xf32>, vector<64x256xf32>, vector<64x256xf32> -> vector<64x256xf32>
    %15 = vector.broadcast %3 : vector<64x1xf32> to vector<64x256xf32>
    %16 = arith.addf %14, %15 : vector<64x256xf32>
    %cst_19 = arith.constant 0.000000e+00 : f32
    %17 = vector.broadcast %cst_19 : f32 to vector<64x256xf32>
    %18 = arith.maximumf %16, %17 : vector<64x256xf32>
    %cst_20 = arith.constant dense<0.000000e+00> : vector<64x256xf32>
    %19 = tpu.matmul %4, %18, %cst_20 {dimension_numbers = #tpu.dot_dimension_numbers<[1], [0], [0], [1], [0, 0, 1, 1], [], []>} : vector<64x64xf32>, vector<64x256xf32>, vector<64x256xf32> -> vector<64x256xf32>
    %20 = vector.broadcast %5 : vector<64x1xf32> to vector<64x256xf32>
    %21 = arith.addf %19, %20 : vector<64x256xf32>
    %cst_21 = arith.constant 0.000000e+00 : f32
    %22 = vector.broadcast %cst_21 : f32 to vector<64x256xf32>
    %23 = arith.maximumf %21, %22 : vector<64x256xf32>
    %cst_22 = arith.constant dense<0.000000e+00> : vector<1x256xf32>
    %24 = tpu.matmul %6, %23, %cst_22 {dimension_numbers = #tpu.dot_dimension_numbers<[1], [0], [0], [1], [0, 0, 1, 1], [], []>} : vector<1x64xf32>, vector<64x256xf32>, vector<1x256xf32> -> vector<1x256xf32>
    %25 = vector.broadcast %7 : vector<1x1xf32> to vector<1x256xf32>
    %26 = arith.addf %24, %25 : vector<1x256xf32>
    %c0_23 = arith.constant 0 : index
    %c0_24 = arith.constant 0 : index
    %27 = vector.load %arg10[%c0_23, %c0_24] : memref<1x256xf32, #tpu.memory_space<vmem>>, vector<1x256xf32>
    tpu.vector_store %arg10[%c0_23, %c0_24], %26 {strides = array<i32>} : memref<1x256xf32, #tpu.memory_space<vmem>>, vector<1x256xf32>,
    return
  }
  func.func @transform_0(%arg0: i32) -> (i32, i32) {
    %c0_i32 = arith.constant 0 : i32
    %c0_i32_0 = arith.constant 0 : i32
    return %arg0, %c0_i32 : i32, i32
  }
  func.func @transform_1(%arg0: i32) -> (i32, i32) {
    %c0_i32 = arith.constant 0 : i32
    %c0_i32_0 = arith.constant 0 : i32
    %c0_i32_1 = arith.constant 0 : i32
    return %c0_i32, %c0_i32_0 : i32, i32
  }
  func.func @transform_2(%arg0: i32) -> (i32, i32) {
    %c0_i32 = arith.constant 0 : i32
    %c0_i32_0 = arith.constant 0 : i32
    %c0_i32_1 = arith.constant 0 : i32
    return %c0_i32, %c0_i32_0 : i32, i32
  }
  func.func @transform_3(%arg0: i32) -> (i32, i32) {
    %c0_i32 = arith.constant 0 : i32
    %c0_i32_0 = arith.constant 0 : i32
    %c0_i32_1 = arith.constant 0 : i32
    return %c0_i32, %c0_i32_0 : i32, i32
  }
  func.func @transform_4(%arg0: i32) -> (i32, i32) {
    %c0_i32 = arith.constant 0 : i32
    %c0_i32_0 = arith.constant 0 : i32
    %c0_i32_1 = arith.constant 0 : i32
    return %c0_i32, %c0_i32_0 : i32, i32
  }
  func.func @transform_5(%arg0: i32) -> (i32, i32) {
    %c0_i32 = arith.constant 0 : i32
    %c0_i32_0 = arith.constant 0 : i32
    %c0_i32_1 = arith.constant 0 : i32
    return %c0_i32, %c0_i32_0 : i32, i32
  }
  func.func @transform_6(%arg0: i32) -> (i32, i32) {
    %c0_i32 = arith.constant 0 : i32
    %c0_i32_0 = arith.constant 0 : i32
    %c0_i32_1 = arith.constant 0 : i32
    return %c0_i32, %c0_i32_0 : i32, i32
  }
  func.func @transform_7(%arg0: i32) -> (i32, i32) {
    %c0_i32 = arith.constant 0 : i32
    %c0_i32_0 = arith.constant 0 : i32
    %c0_i32_1 = arith.constant 0 : i32
    return %c0_i32, %c0_i32_0 : i32, i32
  }
  func.func @transform_8(%arg0: i32) -> (i32, i32) {
    %c0_i32 = arith.constant 0 : i32
    %c0_i32_0 = arith.constant 0 : i32
    %c0_i32_1 = arith.constant 0 : i32
    return %c0_i32, %c0_i32_0 : i32, i32
  }
  func.func @transform_9(%arg0: i32) -> (i32, i32) {
    %c0_i32 = arith.constant 0 : i32
    %c0_i32_0 = arith.constant 0 : i32
    return %c0_i32, %arg0 : i32, i32
  }
}

</mosaic_0001>

<llo_original>
// kernel: tpu_custom_call.1
$region0: #{tpu_custom_call.1}
  #allocation0 [shape = 'u32[]', space=smem, size = 0x4, offset = 0x4, fixed_abs, tag = 'smem constant byte address 0x4 - core index']
  #allocation1 [shape = 'u32[144,128]{1,0:T(1,128)}', space=vmem, size = 0x12000, scoped, tag = 'internal scratch']
  #allocation2 [shape = 'f32[1,1]{1,0:T(1,128)S(1)}', space=vmem, size = 0x200, scoped, tag = 'scoped memory for tpu_custom_call.1']
  %s0 = inlined_call_operand.vmem [shape: f32[256,32], index: 0, kind: input, shape index: {}]
  %s1 = inlined_call_operand.vmem [shape: f32[64,32], index: 1, kind: input, shape index: {}]
  %s2 = inlined_call_operand.vmem [shape: f32[64,1], index: 2, kind: input, shape index: {}]
  %s3 = inlined_call_operand.vmem [shape: f32[64,64], index: 3, kind: input, shape index: {}]
  %s4 = inlined_call_operand.vmem [shape: f32[64,1], index: 4, kind: input, shape index: {}]
  %s5 = inlined_call_operand.vmem [shape: f32[64,64], index: 5, kind: input, shape index: {}]
  %s6 = inlined_call_operand.vmem [shape: f32[64,1], index: 6, kind: input, shape index: {}]
  %s7 = inlined_call_operand.vmem [shape: f32[1,64], index: 7, kind: input, shape index: {}]
  %s8 = inlined_call_operand.<no memory space> [shape: f32[1,1], index: 8, kind: input, shape index: {}]
  %s9 = inlined_call_operand.hbm [shape: f32[1,256], index: 9, kind: output, shape index: {}]
  %s10 = sld [smem:[#allocation0]]
  $region46: #{tpu_custom_call.1} parent=0
    _
  %s12 = ssub.s32 1, %s10
  %s13 = scalar_select 0, %s12, %s10
  %v14 = vstv %s8
  %15 = vst [vmem:[#allocation2] sm:$0x1] %v14
  $region1: #{tpu_custom_call.1} parent=0
    #allocation3 [shape = 'u8[1024]{0}', space=vmem, size = 0x400, scoped, tag = 'output window, operand 0, single buffered']
    #allocation4 [shape = 's32[1]{0}', space=sflag, size = 0x4, scoped, tag = 'scoped memory for tpu_custom_call.1']
    %16 = vsyncpa [#allocation4], 0
    // Predicated region
    $region2: #{tpu_custom_call.1} parent=1 // pred_check
      _
    $region3: #{tpu_custom_call.1} parent=1 // pred_check_branch
      %18 = sbr.rel (0) target = $region5
    $region4: #{tpu_custom_call.1} parent=1 // pred_region
      _
    $region5: #{tpu_custom_call.1} parent=1 // pred_fallthru
      _
    // Predicated region
    $region6: #{tpu_custom_call.1} parent=1 // pred_check
      _
    $region7: #{tpu_custom_call.1} parent=1 // pred_check_branch
      %20 = sbr.rel (0) target = $region9
    $region8: #{tpu_custom_call.1} parent=1 // pred_region
      _
    $region9: #{tpu_custom_call.1} parent=1 // pred_fallthru
      _
    // Predicated region
    $region10: #{tpu_custom_call.1} parent=1 // pred_check
      _
    $region11: #{tpu_custom_call.1} parent=1 // pred_check_branch
      %22 = sbr.rel (0) target = $region13
    $region12: #{tpu_custom_call.1} parent=1 // pred_region
      _
    $region13: #{tpu_custom_call.1} parent=1 // pred_fallthru
      _
    // Predicated region
    $region14: #{tpu_custom_call.1} parent=1 // pred_check
      _
    $region15: #{tpu_custom_call.1} parent=1 // pred_check_branch
      %24 = sbr.rel (0) target = $region17
    $region16: #{tpu_custom_call.1} parent=1 // pred_region
      _
    $region17: #{tpu_custom_call.1} parent=1 // pred_fallthru
      _
    // Predicated region
    $region18: #{tpu_custom_call.1} parent=1 // pred_check
      _
    $region19: #{tpu_custom_call.1} parent=1 // pred_check_branch
      %26 = sbr.rel (0) target = $region21
    $region20: #{tpu_custom_call.1} parent=1 // pred_region
      _
    $region21: #{tpu_custom_call.1} parent=1 // pred_fallthru
      _
    // Predicated region
    $region22: #{tpu_custom_call.1} parent=1 // pred_check
      _
    $region23: #{tpu_custom_call.1} parent=1 // pred_check_branch
      %28 = sbr.rel (0) target = $region25
    $region24: #{tpu_custom_call.1} parent=1 // pred_region
      _
    $region25: #{tpu_custom_call.1} parent=1 // pred_fallthru
      _
    // Predicated region
    $region26: #{tpu_custom_call.1} parent=1 // pred_check
      _
    $region27: #{tpu_custom_call.1} parent=1 // pred_check_branch
      %30 = sbr.rel (0) target = $region29
    $region28: #{tpu_custom_call.1} parent=1 // pred_region
      _
    $region29: #{tpu_custom_call.1} parent=1 // pred_fallthru
      _
    // Predicated region
    $region30: #{tpu_custom_call.1} parent=1 // pred_check
      _
    $region31: #{tpu_custom_call.1} parent=1 // pred_check_branch
      %32 = sbr.rel (0) target = $region33
    $region32: #{tpu_custom_call.1} parent=1 // pred_region
      _
    $region33: #{tpu_custom_call.1} parent=1 // pred_fallthru
      _
    // Predicated region
    $region34: #{tpu_custom_call.1} parent=1 // pred_check
      _
    $region35: #{tpu_custom_call.1} parent=1 // pred_check_branch
      %34 = sbr.rel (0) target = $region37
    $region36: #{tpu_custom_call.1} parent=1 // pred_region
      _
    $region37: #{tpu_custom_call.1} parent=1 // pred_fallthru
      _
    %v35 = vld [vmem:[%s1] sm:$0xff]
    %v36 = vld [vmem:[%s1 + $0x8] sm:$0xff]
    %v37 = vld [vmem:[%s1 + $0x10] sm:$0xff]
    %v38 = vld [vmem:[%s1 + $0x18] sm:$0xff]
    %v39 = vld [vmem:[%s1 + $0x20] sm:$0xff]
    %v40 = vld [vmem:[%s1 + $0x28] sm:$0xff]
    %v41 = vld [vmem:[%s1 + $0x30] sm:$0xff]
    %v42 = vld [vmem:[%s1 + $0x38] sm:$0xff]
    %v43 = vld [vmem:[%s2] sm:$0xff]
    %v44 = vld [vmem:[%s2 + $0x8] sm:$0xff]
    %v45 = vld [vmem:[%s2 + $0x10] sm:$0xff]
    %v46 = vld [vmem:[%s2 + $0x18] sm:$0xff]
    %v47 = vld [vmem:[%s2 + $0x20] sm:$0xff]
    %v48 = vld [vmem:[%s2 + $0x28] sm:$0xff]
    %v49 = vld [vmem:[%s2 + $0x30] sm:$0xff]
    %v50 = vld [vmem:[%s2 + $0x38] sm:$0xff]
    %v51 = vld [vmem:[%s3] sm:$0xff]
    %v52 = vld [vmem:[%s3 + $0x8] sm:$0xff]
    %v53 = vld [vmem:[%s3 + $0x10] sm:$0xff]
    %v54 = vld [vmem:[%s3 + $0x18] sm:$0xff]
    %v55 = vld [vmem:[%s3 + $0x20] sm:$0xff]
    %v56 = vld [vmem:[%s3 + $0x28] sm:$0xff]
    %v57 = vld [vmem:[%s3 + $0x30] sm:$0xff]
    %v58 = vld [vmem:[%s3 + $0x38] sm:$0xff]
    %v59 = vld [vmem:[%s4] sm:$0xff]
    %v60 = vld [vmem:[%s4 + $0x8] sm:$0xff]
    %v61 = vld [vmem:[%s4 + $0x10] sm:$0xff]
    %v62 = vld [vmem:[%s4 + $0x18] sm:$0xff]
    %v63 = vld [vmem:[%s4 + $0x20] sm:$0xff]
    %v64 = vld [vmem:[%s4 + $0x28] sm:$0xff]
    %v65 = vld [vmem:[%s4 + $0x30] sm:$0xff]
    %v66 = vld [vmem:[%s4 + $0x38] sm:$0xff]
    %v67 = vld [vmem:[%s5] sm:$0xff]
    %v68 = vld [vmem:[%s5 + $0x8] sm:$0xff]
    %v69 = vld [vmem:[%s5 + $0x10] sm:$0xff]
    %v70 = vld [vmem:[%s5 + $0x18] sm:$0xff]
    %v71 = vld [vmem:[%s5 + $0x20] sm:$0xff]
    %v72 = vld [vmem:[%s5 + $0x28] sm:$0xff]
    %v73 = vld [vmem:[%s5 + $0x30] sm:$0xff]
    %v74 = vld [vmem:[%s5 + $0x38] sm:$0xff]
    %v75 = vld [vmem:[%s6] sm:$0xff]
    %v76 = vld [vmem:[%s6 + $0x8] sm:$0xff]
    %v77 = vld [vmem:[%s6 + $0x10] sm:$0xff]
    %v78 = vld [vmem:[%s6 + $0x18] sm:$0xff]
    %v79 = vld [vmem:[%s6 + $0x20] sm:$0xff]
    %v80 = vld [vmem:[%s6 + $0x28] sm:$0xff]
    %v81 = vld [vmem:[%s6 + $0x30] sm:$0xff]
    %v82 = vld [vmem:[%s6 + $0x38] sm:$0xff]
    %v83 = vld [vmem:[%s7] sm:$0x1]
    %v84 = vld [vmem:[#allocation2] sm:$0x1]
    %v85 = vld [vmem:[%s0] sm:$0xff]
    %v86 = vld [vmem:[%s0 + $0x8] sm:$0xff]
    %v87 = vld [vmem:[%s0 + $0x10] sm:$0xff]
    %v88 = vld [vmem:[%s0 + $0x18] sm:$0xff]
    %v89 = vld [vmem:[%s0 + $0x20] sm:$0xff]
    %v90 = vld [vmem:[%s0 + $0x28] sm:$0xff]
    %v91 = vld [vmem:[%s0 + $0x30] sm:$0xff]
    %v92 = vld [vmem:[%s0 + $0x38] sm:$0xff]
    %v93 = vld [vmem:[%s0 + $0x40] sm:$0xff]
    %v94 = vld [vmem:[%s0 + $0x48] sm:$0xff]
    %v95 = vld [vmem:[%s0 + $0x50] sm:$0xff]
    %v96 = vld [vmem:[%s0 + $0x58] sm:$0xff]
    %v97 = vld [vmem:[%s0 + $0x60] sm:$0xff]
    %v98 = vld [vmem:[%s0 + $0x68] sm:$0xff]
    %v99 = vld [vmem:[%s0 + $0x70] sm:$0xff]
    %v100 = vld [vmem:[%s0 + $0x78] sm:$0xff]
    %v101 = vld [vmem:[%s0 + $0x80] sm:$0xff]
    %v102 = vld [vmem:[%s0 + $0x88] sm:$0xff]
    %v103 = vld [vmem:[%s0 + $0x90] sm:$0xff]
    %v104 = vld [vmem:[%s0 + $0x98] sm:$0xff]
    %v105 = vld [vmem:[%s0 + $0xa0] sm:$0xff]
    %v106 = vld [vmem:[%s0 + $0xa8] sm:$0xff]
    %v107 = vld [vmem:[%s0 + $0xb0] sm:$0xff]
    %v108 = vld [vmem:[%s0 + $0xb8] sm:$0xff]
    %v109 = vld [vmem:[%s0 + $0xc0] sm:$0xff]
    %v110 = vld [vmem:[%s0 + $0xc8] sm:$0xff]
    %v111 = vld [vmem:[%s0 + $0xd0] sm:$0xff]
    %v112 = vld [vmem:[%s0 + $0xd8] sm:$0xff]
    %v113 = vld [vmem:[%s0 + $0xe0] sm:$0xff]
    %v114 = vld [vmem:[%s0 + $0xe8] sm:$0xff]
    %v115 = vld [vmem:[%s0 + $0xf0] sm:$0xff]
    %v116 = vld [vmem:[%s0 + $0xf8] sm:$0xff]
    %118 = vset.pattern.permute.xlu0 0
    %119 = vperm.xlu0 %118, %v43
    %v120 = vpop.permute.xlu0 %119
    %123 = vset.pattern.permute.xlu0 0
    %124 = vperm.xlu0 %123, %v44
    %v125 = vpop.permute.xlu0 %124
    %128 = vset.pattern.permute.xlu0 0
    %129 = vperm.xlu0 %128, %v45
    %v130 = vpop.permute.xlu0 %129
    %133 = vset.pattern.permute.xlu0 0
    %134 = vperm.xlu0 %133, %v46
    %v135 = vpop.permute.xlu0 %134
    %138 = vset.pattern.permute.xlu0 0
    %139 = vperm.xlu0 %138, %v47
    %v140 = vpop.permute.xlu0 %139
    %143 = vset.pattern.permute.xlu0 0
    %144 = vperm.xlu0 %143, %v48
    %v145 = vpop.permute.xlu0 %144
    %148 = vset.pattern.permute.xlu0 0
    %149 = vperm.xlu0 %148, %v49
    %v150 = vpop.permute.xlu0 %149
    %153 = vset.pattern.permute.xlu0 0
    %154 = vperm.xlu0 %153, %v50
    %v155 = vpop.permute.xlu0 %154
    %vm157 = vcmask 261120
    %v159 = vsel %vm157, %v35, 0
    %v162 = vsel %vm157, %v36, 0
    %v165 = vsel %vm157, %v37, 0
    %v168 = vsel %vm157, %v38, 0
    %v171 = vsel %vm157, %v39, 0
    %v174 = vsel %vm157, %v40, 0
    %v177 = vsel %vm157, %v41, 0
    %v180 = vsel %vm157, %v42, 0
    %v183 = vsel %vm157, %v85, 0
    %v186 = vsel %vm157, %v86, 0
    %v189 = vsel %vm157, %v87, 0
    %v192 = vsel %vm157, %v88, 0
    %v195 = vsel %vm157, %v89, 0
    %v198 = vsel %vm157, %v90, 0
    %v201 = vsel %vm157, %v91, 0
    %v204 = vsel %vm157, %v92, 0
    %v207 = vsel %vm157, %v93, 0
    %v210 = vsel %vm157, %v94, 0
    %v213 = vsel %vm157, %v95, 0
    %v216 = vsel %vm157, %v96, 0
    %v219 = vsel %vm157, %v97, 0
    %v222 = vsel %vm157, %v98, 0
    %v225 = vsel %vm157, %v99, 0
    %v228 = vsel %vm157, %v100, 0
    %v231 = vsel %vm157, %v101, 0
    %v234 = vsel %vm157, %v102, 0
    %v237 = vsel %vm157, %v103, 0
    %v240 = vsel %vm157, %v104, 0
    %v243 = vsel %vm157, %v105, 0
    %v246 = vsel %vm157, %v106, 0
    %v249 = vsel %vm157, %v107, 0
    %v252 = vsel %vm157, %v108, 0
    %v255 = vsel %vm157, %v109, 0
    %v258 = vsel %vm157, %v110, 0
    %v261 = vsel %vm157, %v111, 0
    %v264 = vsel %vm157, %v112, 0
    %v267 = vsel %vm157, %v113, 0
    %v270 = vsel %vm157, %v114, 0
    %v273 = vsel %vm157, %v115, 0
    %v276 = vsel %vm157, %v116, 0
    %278 = vmatprep.subr.mxu0 0.0
    %279 = vmatpush1.xpose.msra.mxu0 %v228
    %280 = vmatprep.subr.mxu0 0.0
    %281 = vmatpush1.xpose.msra.mxu0 %v225
    %282 = vmatprep.subr.mxu0 0.0
    %283 = vmatpush1.xpose.msra.mxu0 %v222
    %284 = vmatprep.subr.mxu0 0.0
    %285 = vmatpush1.xpose.msra.mxu0 %v219
    %286 = vmatprep.subr.mxu0 0.0
    %287 = vmatpush1.xpose.msra.mxu0 %v216
    %288 = vmatprep.subr.mxu0 0.0
    %289 = vmatpush1.xpose.msra.mxu0 %v213
    %290 = vmatprep.subr.mxu0 0.0
    %291 = vmatpush1.xpose.msra.mxu0 %v210
    %292 = vmatprep.subr.mxu0 0.0
    %293 = vmatpush1.xpose.msra.mxu0 %v207
    %294 = vmatprep.subr.mxu0 0.0
    %295 = vmatpush1.xpose.msra.mxu0 %v204
    %296 = vmatprep.subr.mxu0 0.0
    %297 = vmatpush1.xpose.msra.mxu0 %v201
    %298 = vmatprep.subr.mxu0 0.0
    %299 = vmatpush1.xpose.msra.mxu0 %v198
    %300 = vmatprep.subr.mxu0 0.0
    %301 = vmatpush1.xpose.msra.mxu0 %v195
    %302 = vmatprep.subr.mxu0 0.0
    %303 = vmatpush1.xpose.msra.mxu0 %v192
    %304 = vmatprep.subr.mxu0 0.0
    %305 = vmatpush1.xpose.msra.mxu0 %v189
    %306 = vmatprep.subr.mxu0 0.0
    %307 = vmatpush1.xpose.msra.mxu0 %v186
    %308 = vmatprep.subr.mxu0 0.0
    %309 = vmatpush1.xpose.msra.mxu0 %v183
    %310 = vmatprep.subr.mxu0 0.0
    %311 = vmatpush2.xpose.msra.mxu0 %v276
    %312 = vmatprep.subr.mxu0 0.0
    %313 = vmatpush2.xpose.msra.mxu0 %v273
    %314 = vmatprep.subr.mxu0 0.0
    %315 = vmatpush2.xpose.msra.mxu0 %v270
    %316 = vmatprep.subr.mxu0 0.0
    %317 = vmatpush2.xpose.msra.mxu0 %v267
    %318 = vmatprep.subr.mxu0 0.0
    %319 = vmatpush2.xpose.msra.mxu0 %v264
    %320 = vmatprep.subr.mxu0 0.0
    %321 = vmatpush2.xpose.msra.mxu0 %v261
    %322 = vmatprep.subr.mxu0 0.0
    %323 = vmatpush2.xpose.msra.mxu0 %v258
    %324 = vmatprep.subr.mxu0 0.0
    %325 = vmatpush2.xpose.msra.mxu0 %v255
    %326 = vmatprep.subr.mxu0 0.0
    %327 = vmatpush2.xpose.msra.mxu0 %v252
    %328 = vmatprep.subr.mxu0 0.0
    %329 = vmatpush2.xpose.msra.mxu0 %v249
    %330 = vmatprep.subr.mxu0 0.0
    %331 = vmatpush2.xpose.msra.mxu0 %v246
    %332 = vmatprep.subr.mxu0 0.0
    %333 = vmatpush2.xpose.msra.mxu0 %v243
    %334 = vmatprep.subr.mxu0 0.0
    %335 = vmatpush2.xpose.msra.mxu0 %v240
    %336 = vmatprep.subr.mxu0 0.0
    %337 = vmatpush2.xpose.msra.mxu0 %v237
    %338 = vmatprep.subr.mxu0 0.0
    %339 = vmatpush2.xpose.msra.mxu0 %v234
    %340 = vmatprep.subr.mxu0 0.0
    %341 = vmatpush2.xpose.msra.mxu0 %v231
    %342 = vmatprep.mubr.f32.mxu0 0.0
    %343 = vmatmul.mubr.f32.gmra.mxu0 %v159
    %v344 = vpop.f32.mrf.mxu0
    %v345 = vadd.f32 %v120, %v344
    %v346 = vpop.f32.mrf.mxu0
    %v347 = vadd.f32 %v120, %v346
    %348 = vmatprep.mubr.f32.mxu0 0.0
    %349 = vmatmul.mubr.f32.gmra.mxu0 %v162
    %v350 = vpop.f32.mrf.mxu0
    %v351 = vadd.f32 %v125, %v350
    %v352 = vpop.f32.mrf.mxu0
    %v353 = vadd.f32 %v125, %v352
    %354 = vmatprep.mubr.f32.mxu0 0.0
    %355 = vmatmul.mubr.f32.gmra.mxu0 %v165
    %v356 = vpop.f32.mrf.mxu0
    %v357 = vadd.f32 %v130, %v356
    %v358 = vpop.f32.mrf.mxu0
    %v359 = vadd.f32 %v130, %v358
    %360 = vmatprep.mubr.f32.mxu0 0.0
    %361 = vmatmul.mubr.f32.gmra.mxu0 %v168
    %v362 = vpop.f32.mrf.mxu0
    %v363 = vadd.f32 %v135, %v362
    %v364 = vpop.f32.mrf.mxu0
    %v365 = vadd.f32 %v135, %v364
    %366 = vmatprep.mubr.f32.mxu0 0.0
    %367 = vmatmul.mubr.f32.gmra.mxu0 %v171
    %v368 = vpop.f32.mrf.mxu0
    %v369 = vadd.f32 %v140, %v368
    %v370 = vpop.f32.mrf.mxu0
    %v371 = vadd.f32 %v140, %v370
    %372 = vmatprep.mubr.f32.mxu0 0.0
    %373 = vmatmul.mubr.f32.gmra.mxu0 %v174
    %v374 = vpop.f32.mrf.mxu0
    %v375 = vadd.f32 %v145, %v374
    %v376 = vpop.f32.mrf.mxu0
    %v377 = vadd.f32 %v145, %v376
    %378 = vmatprep.mubr.f32.mxu0 0.0
    %379 = vmatmul.mubr.f32.gmra.mxu0 %v177
    %v380 = vpop.f32.mrf.mxu0
    %v381 = vadd.f32 %v150, %v380
    %v382 = vpop.f32.mrf.mxu0
    %v383 = vadd.f32 %v150, %v382
    %384 = vmatprep.mubr.f32.mxu0 0.0
    %385 = vmatmul.mubr.f32.gmra.mxu0 %v180
    %v386 = vpop.f32.mrf.mxu0
    %v387 = vadd.f32 %v155, %v386
    %v388 = vpop.f32.mrf.mxu0
    %v389 = vadd.f32 %v155, %v388
    %390 = vdwg.mxu0
    %v391 = vmax.f32 %v345, 0.0
    %v392 = vmax.f32 %v347, 0.0
    %v393 = vmax.f32 %v351, 0.0
    %v394 = vmax.f32 %v353, 0.0
    %v395 = vmax.f32 %v357, 0.0
    %v396 = vmax.f32 %v359, 0.0
    %v397 = vmax.f32 %v363, 0.0
    %v398 = vmax.f32 %v365, 0.0
    %v399 = vmax.f32 %v369, 0.0
    %v400 = vmax.f32 %v371, 0.0
    %v401 = vmax.f32 %v375, 0.0
    %v402 = vmax.f32 %v377, 0.0
    %v403 = vmax.f32 %v381, 0.0
    %v404 = vmax.f32 %v383, 0.0
    %v405 = vmax.f32 %v387, 0.0
    %v406 = vmax.f32 %v389, 0.0
    %408 = vset.pattern.permute.xlu0 0
    %409 = vperm.xlu0 %408, %v59
    %v410 = vpop.permute.xlu0 %409
    %413 = vset.pattern.permute.xlu0 0
    %414 = vperm.xlu0 %413, %v60
    %v415 = vpop.permute.xlu0 %414
    %418 = vset.pattern.permute.xlu0 0
    %419 = vperm.xlu0 %418, %v61
    %v420 = vpop.permute.xlu0 %419
    %423 = vset.pattern.permute.xlu0 0
    %424 = vperm.xlu0 %423, %v62
    %v425 = vpop.permute.xlu0 %424
    %428 = vset.pattern.permute.xlu0 0
    %429 = vperm.xlu0 %428, %v63
    %v430 = vpop.permute.xlu0 %429
    %433 = vset.pattern.permute.xlu0 0
    %434 = vperm.xlu0 %433, %v64
    %v435 = vpop.permute.xlu0 %434
    %438 = vset.pattern.permute.xlu0 0
    %439 = vperm.xlu0 %438, %v65
    %v440 = vpop.permute.xlu0 %439
    %443 = vset.pattern.permute.xlu0 0
    %444 = vperm.xlu0 %443, %v66
    %v445 = vpop.permute.xlu0 %444
    %vm447 = vcmask 523264
    %v449 = vsel %vm447, %v51, 0
    %v452 = vsel %vm447, %v52, 0
    %v455 = vsel %vm447, %v53, 0
    %v458 = vsel %vm447, %v54, 0
    %v461 = vsel %vm447, %v55, 0
    %v464 = vsel %vm447, %v56, 0
    %v467 = vsel %vm447, %v57, 0
    %v470 = vsel %vm447, %v58, 0
    %472 = vmatprep.subr.mxu0 0.0
    %473 = vmatpush1.msra.mxu0 0.0
    %474 = vmatprep.subr.mxu0 0.0
    %475 = vmatpush1.msra.mxu0 0.0
    %476 = vmatprep.subr.mxu0 0.0
    %477 = vmatpush1.msra.mxu0 0.0
    %478 = vmatprep.subr.mxu0 0.0
    %479 = vmatpush1.msra.mxu0 0.0
    %480 = vmatprep.subr.mxu0 0.0
    %481 = vmatpush1.msra.mxu0 0.0
    %482 = vmatprep.subr.mxu0 0.0
    %483 = vmatpush1.msra.mxu0 0.0
    %484 = vmatprep.subr.mxu0 0.0
    %485 = vmatpush1.msra.mxu0 0.0
    %486 = vmatprep.subr.mxu0 0.0
    %487 = vmatpush1.msra.mxu0 0.0
    %488 = vmatprep.subr.mxu0 %v406
    %489 = vmatpush1.msra.mxu0 %v405
    %490 = vmatprep.subr.mxu0 %v404
    %491 = vmatpush1.msra.mxu0 %v403
    %492 = vmatprep.subr.mxu0 %v402
    %493 = vmatpush1.msra.mxu0 %v401
    %494 = vmatprep.subr.mxu0 %v400
    %495 = vmatpush1.msra.mxu0 %v399
    %496 = vmatprep.subr.mxu0 %v398
    %497 = vmatpush1.msra.mxu0 %v397
    %498 = vmatprep.subr.mxu0 %v396
    %499 = vmatpush1.msra.mxu0 %v395
    %500 = vmatprep.subr.mxu0 %v394
    %501 = vmatpush1.msra.mxu0 %v393
    %502 = vmatprep.subr.mxu0 %v392
    %503 = vmatpush1.msra.mxu0 %v391
    %504 = vmatprep.subr.mxu0 0.0
    %505 = vmatpush2.msra.mxu0 0.0
    %506 = vmatprep.subr.mxu0 0.0
    %507 = vmatpush2.msra.mxu0 0.0
    %508 = vmatprep.subr.mxu0 0.0
    %509 = vmatpush2.msra.mxu0 0.0
    %510 = vmatprep.subr.mxu0 0.0
    %511 = vmatpush2.msra.mxu0 0.0
    %512 = vmatprep.subr.mxu0 0.0
    %513 = vmatpush2.msra.mxu0 0.0
    %514 = vmatprep.subr.mxu0 0.0
    %515 = vmatpush2.msra.mxu0 0.0
    %516 = vmatprep.subr.mxu0 0.0
    %517 = vmatpush2.msra.mxu0 0.0
    %518 = vmatprep.subr.mxu0 0.0
    %519 = vmatpush2.msra.mxu0 0.0
    %520 = vmatprep.subr.mxu0 0.0
    %521 = vmatpush2.msra.mxu0 0.0
    %522 = vmatprep.subr.mxu0 0.0
    %523 = vmatpush2.msra.mxu0 0.0
    %524 = vmatprep.subr.mxu0 0.0
    %525 = vmatpush2.msra.mxu0 0.0
    %526 = vmatprep.subr.mxu0 0.0
    %527 = vmatpush2.msra.mxu0 0.0
    %528 = vmatprep.subr.mxu0 0.0
    %529 = vmatpush2.msra.mxu0 0.0
    %530 = vmatprep.subr.mxu0 0.0
    %531 = vmatpush2.msra.mxu0 0.0
    %532 = vmatprep.subr.mxu0 0.0
    %533 = vmatpush2.msra.mxu0 0.0
    %534 = vmatprep.subr.mxu0 0.0
    %535 = vmatpush2.msra.mxu0 0.0
    %536 = vmatprep.mubr.f32.mxu0 0.0
    %537 = vmatmul.mubr.f32.gmra.mxu0 %v449
    %v538 = vpop.f32.mrf.mxu0
    %v539 = vadd.f32 %v410, %v538
    %v540 = vpop.f32.mrf.mxu0
    %v541 = vadd.f32 %v410, %v540
    %542 = vmatprep.mubr.f32.mxu0 0.0
    %543 = vmatmul.mubr.f32.gmra.mxu0 %v452
    %v544 = vpop.f32.mrf.mxu0
    %v545 = vadd.f32 %v415, %v544
    %v546 = vpop.f32.mrf.mxu0
    %v547 = vadd.f32 %v415, %v546
    %548 = vmatprep.mubr.f32.mxu0 0.0
    %549 = vmatmul.mubr.f32.gmra.mxu0 %v455
    %v550 = vpop.f32.mrf.mxu0
    %v551 = vadd.f32 %v420, %v550
    %v552 = vpop.f32.mrf.mxu0
    %v553 = vadd.f32 %v420, %v552
    %554 = vmatprep.mubr.f32.mxu0 0.0
    %555 = vmatmul.mubr.f32.gmra.mxu0 %v458
    %v556 = vpop.f32.mrf.mxu0
    %v557 = vadd.f32 %v425, %v556
    %v558 = vpop.f32.mrf.mxu0
    %v559 = vadd.f32 %v425, %v558
    %560 = vmatprep.mubr.f32.mxu0 0.0
    %561 = vmatmul.mubr.f32.gmra.mxu0 %v461
    %v562 = vpop.f32.mrf.mxu0
    %v563 = vadd.f32 %v430, %v562
    %v564 = vpop.f32.mrf.mxu0
    %v565 = vadd.f32 %v430, %v564
    %566 = vmatprep.mubr.f32.mxu0 0.0
    %567 = vmatmul.mubr.f32.gmra.mxu0 %v464
    %v568 = vpop.f32.mrf.mxu0
    %v569 = vadd.f32 %v435, %v568
    %v570 = vpop.f32.mrf.mxu0
    %v571 = vadd.f32 %v435, %v570
    %572 = vmatprep.mubr.f32.mxu0 0.0
    %573 = vmatmul.mubr.f32.gmra.mxu0 %v467
    %v574 = vpop.f32.mrf.mxu0
    %v575 = vadd.f32 %v440, %v574
    %v576 = vpop.f32.mrf.mxu0
    %v577 = vadd.f32 %v440, %v576
    %578 = vmatprep.mubr.f32.mxu0 0.0
    %579 = vmatmul.mubr.f32.gmra.mxu0 %v470
    %v580 = vpop.f32.mrf.mxu0
    %v581 = vadd.f32 %v445, %v580
    %v582 = vpop.f32.mrf.mxu0
    %v583 = vadd.f32 %v445, %v582
    %584 = vdwg.mxu0
    %v585 = vmax.f32 %v539, 0.0
    %v586 = vmax.f32 %v541, 0.0
    %v587 = vmax.f32 %v545, 0.0
    %v588 = vmax.f32 %v547, 0.0
    %v589 = vmax.f32 %v551, 0.0
    %v590 = vmax.f32 %v553, 0.0
    %v591 = vmax.f32 %v557, 0.0
    %v592 = vmax.f32 %v559, 0.0
    %v593 = vmax.f32 %v563, 0.0
    %v594 = vmax.f32 %v565, 0.0
    %v595 = vmax.f32 %v569, 0.0
    %v596 = vmax.f32 %v571, 0.0
    %v597 = vmax.f32 %v575, 0.0
    %v598 = vmax.f32 %v577, 0.0
    %v599 = vmax.f32 %v581, 0.0
    %v600 = vmax.f32 %v583, 0.0
    %602 = vset.pattern.permute.xlu0 0
    %603 = vperm.xlu0 %602, %v75
    %v604 = vpop.permute.xlu0 %603
    %607 = vset.pattern.permute.xlu0 0
    %608 = vperm.xlu0 %607, %v76
    %v609 = vpop.permute.xlu0 %608
    %612 = vset.pattern.permute.xlu0 0
    %613 = vperm.xlu0 %612, %v77
    %v614 = vpop.permute.xlu0 %613
    %617 = vset.pattern.permute.xlu0 0
    %618 = vperm.xlu0 %617, %v78
    %v619 = vpop.permute.xlu0 %618
    %622 = vset.pattern.permute.xlu0 0
    %623 = vperm.xlu0 %622, %v79
    %v624 = vpop.permute.xlu0 %623
    %627 = vset.pattern.permute.xlu0 0
    %628 = vperm.xlu0 %627, %v80
    %v629 = vpop.permute.xlu0 %628
    %632 = vset.pattern.permute.xlu0 0
    %633 = vperm.xlu0 %632, %v81
    %v634 = vpop.permute.xlu0 %633
    %637 = vset.pattern.permute.xlu0 0
    %638 = vperm.xlu0 %637, %v82
    %v639 = vpop.permute.xlu0 %638
    %v642 = vsel %vm447, %v67, 0
    %v645 = vsel %vm447, %v68, 0
    %v648 = vsel %vm447, %v69, 0
    %v651 = vsel %vm447, %v70, 0
    %v654 = vsel %vm447, %v71, 0
    %v657 = vsel %vm447, %v72, 0
    %v660 = vsel %vm447, %v73, 0
    %v663 = vsel %vm447, %v74, 0
    %665 = vmatprep.subr.mxu0 0.0
    %666 = vmatpush1.msra.mxu0 0.0
    %667 = vmatprep.subr.mxu0 0.0
    %668 = vmatpush1.msra.mxu0 0.0
    %669 = vmatprep.subr.mxu0 0.0
    %670 = vmatpush1.msra.mxu0 0.0
    %671 = vmatprep.subr.mxu0 0.0
    %672 = vmatpush1.msra.mxu0 0.0
    %673 = vmatprep.subr.mxu0 0.0
    %674 = vmatpush1.msra.mxu0 0.0
    %675 = vmatprep.subr.mxu0 0.0
    %676 = vmatpush1.msra.mxu0 0.0
    %677 = vmatprep.subr.mxu0 0.0
    %678 = vmatpush1.msra.mxu0 0.0
    %679 = vmatprep.subr.mxu0 0.0
    %680 = vmatpush1.msra.mxu0 0.0
    %681 = vmatprep.subr.mxu0 %v600
    %682 = vmatpush1.msra.mxu0 %v599
    %683 = vmatprep.subr.mxu0 %v598
    %684 = vmatpush1.msra.mxu0 %v597
    %685 = vmatprep.subr.mxu0 %v596
    %686 = vmatpush1.msra.mxu0 %v595
    %687 = vmatprep.subr.mxu0 %v594
    %688 = vmatpush1.msra.mxu0 %v593
    %689 = vmatprep.subr.mxu0 %v592
    %690 = vmatpush1.msra.mxu0 %v591
    %691 = vmatprep.subr.mxu0 %v590
    %692 = vmatpush1.msra.mxu0 %v589
    %693 = vmatprep.subr.mxu0 %v588
    %694 = vmatpush1.msra.mxu0 %v587
    %695 = vmatprep.subr.mxu0 %v586
    %696 = vmatpush1.msra.mxu0 %v585
    %697 = vmatprep.subr.mxu0 0.0
    %698 = vmatpush2.msra.mxu0 0.0
    %699 = vmatprep.subr.mxu0 0.0
    %700 = vmatpush2.msra.mxu0 0.0
    %701 = vmatprep.subr.mxu0 0.0
    %702 = vmatpush2.msra.mxu0 0.0
    %703 = vmatprep.subr.mxu0 0.0
    %704 = vmatpush2.msra.mxu0 0.0
    %705 = vmatprep.subr.mxu0 0.0
    %706 = vmatpush2.msra.mxu0 0.0
    %707 = vmatprep.subr.mxu0 0.0
    %708 = vmatpush2.msra.mxu0 0.0
    %709 = vmatprep.subr.mxu0 0.0
    %710 = vmatpush2.msra.mxu0 0.0
    %711 = vmatprep.subr.mxu0 0.0
    %712 = vmatpush2.msra.mxu0 0.0
    %713 = vmatprep.subr.mxu0 0.0
    %714 = vmatpush2.msra.mxu0 0.0
    %715 = vmatprep.subr.mxu0 0.0
    %716 = vmatpush2.msra.mxu0 0.0
    %717 = vmatprep.subr.mxu0 0.0
    %718 = vmatpush2.msra.mxu0 0.0
    %719 = vmatprep.subr.mxu0 0.0
    %720 = vmatpush2.msra.mxu0 0.0
    %721 = vmatprep.subr.mxu0 0.0
    %722 = vmatpush2.msra.mxu0 0.0
    %723 = vmatprep.subr.mxu0 0.0
    %724 = vmatpush2.msra.mxu0 0.0
    %725 = vmatprep.subr.mxu0 0.0
    %726 = vmatpush2.msra.mxu0 0.0
    %727 = vmatprep.subr.mxu0 0.0
    %728 = vmatpush2.msra.mxu0 0.0
    %729 = vmatprep.mubr.f32.mxu0 0.0
    %730 = vmatmul.mubr.f32.gmra.mxu0 %v642
    %v731 = vpop.f32.mrf.mxu0
    %v732 = vadd.f32 %v604, %v731
    %v733 = vpop.f32.mrf.mxu0
    %v734 = vadd.f32 %v604, %v733
    %735 = vmatprep.mubr.f32.mxu0 0.0
    %736 = vmatmul.mubr.f32.gmra.mxu0 %v645
    %v737 = vpop.f32.mrf.mxu0
    %v738 = vadd.f32 %v609, %v737
    %v739 = vpop.f32.mrf.mxu0
    %v740 = vadd.f32 %v609, %v739
    %741 = vmatprep.mubr.f32.mxu0 0.0
    %742 = vmatmul.mubr.f32.gmra.mxu0 %v648
    %v743 = vpop.f32.mrf.mxu0
    %v744 = vadd.f32 %v614, %v743
    %v745 = vpop.f32.mrf.mxu0
    %v746 = vadd.f32 %v614, %v745
    %747 = vmatprep.mubr.f32.mxu0 0.0
    %748 = vmatmul.mubr.f32.gmra.mxu0 %v651
    %v749 = vpop.f32.mrf.mxu0
    %v750 = vadd.f32 %v619, %v749
    %v751 = vpop.f32.mrf.mxu0
    %v752 = vadd.f32 %v619, %v751
    %753 = vmatprep.mubr.f32.mxu0 0.0
    %754 = vmatmul.mubr.f32.gmra.mxu0 %v654
    %v755 = vpop.f32.mrf.mxu0
    %v756 = vadd.f32 %v624, %v755
    %v757 = vpop.f32.mrf.mxu0
    %v758 = vadd.f32 %v624, %v757
    %759 = vmatprep.mubr.f32.mxu0 0.0
    %760 = vmatmul.mubr.f32.gmra.mxu0 %v657
    %v761 = vpop.f32.mrf.mxu0
    %v762 = vadd.f32 %v629, %v761
    %v763 = vpop.f32.mrf.mxu0
    %v764 = vadd.f32 %v629, %v763
    %765 = vmatprep.mubr.f32.mxu0 0.0
    %766 = vmatmul.mubr.f32.gmra.mxu0 %v660
    %v767 = vpop.f32.mrf.mxu0
    %v768 = vadd.f32 %v634, %v767
    %v769 = vpop.f32.mrf.mxu0
    %v770 = vadd.f32 %v634, %v769
    %771 = vmatprep.mubr.f32.mxu0 0.0
    %772 = vmatmul.mubr.f32.gmra.mxu0 %v663
    %v773 = vpop.f32.mrf.mxu0
    %v774 = vadd.f32 %v639, %v773
    %v775 = vpop.f32.mrf.mxu0
    %v776 = vadd.f32 %v639, %v775
    %777 = vdwg.mxu0
    %v778 = vmax.f32 %v732, 0.0
    %v779 = vmax.f32 %v734, 0.0
    %v780 = vmax.f32 %v738, 0.0
    %v781 = vmax.f32 %v740, 0.0
    %v782 = vmax.f32 %v744, 0.0
    %v783 = vmax.f32 %v746, 0.0
    %v784 = vmax.f32 %v750, 0.0
    %v785 = vmax.f32 %v752, 0.0
    %v786 = vmax.f32 %v756, 0.0
    %v787 = vmax.f32 %v758, 0.0
    %v788 = vmax.f32 %v762, 0.0
    %v789 = vmax.f32 %v764, 0.0
    %v790 = vmax.f32 %v768, 0.0
    %v791 = vmax.f32 %v770, 0.0
    %v792 = vmax.f32 %v774, 0.0
    %v793 = vmax.f32 %v776, 0.0
    %795 = vset.pattern.permute.xlu0 0
    %796 = vperm.xlu0 %795, %v84
    %v797 = vpop.permute.xlu0 %796
    %v799 = vlaneseq
    %v800 = vshrl.u32 %v799, 7
    %v801 = vsub.s32 0, %v800
    %v802 = vrot.slane %v797, %v801
    %v804 = vsel %vm447, %v83, 0
    %806 = vmatprep.subr.mxu0 0.0
    %807 = vmatpush1.msra.mxu0 0.0
    %808 = vmatprep.subr.mxu0 0.0
    %809 = vmatpush1.msra.mxu0 0.0
    %810 = vmatprep.subr.mxu0 0.0
    %811 = vmatpush1.msra.mxu0 0.0
    %812 = vmatprep.subr.mxu0 0.0
    %813 = vmatpush1.msra.mxu0 0.0
    %814 = vmatprep.subr.mxu0 0.0
    %815 = vmatpush1.msra.mxu0 0.0
    %816 = vmatprep.subr.mxu0 0.0
    %817 = vmatpush1.msra.mxu0 0.0
    %818 = vmatprep.subr.mxu0 0.0
    %819 = vmatpush1.msra.mxu0 0.0
    %820 = vmatprep.subr.mxu0 0.0
    %821 = vmatpush1.msra.mxu0 0.0
    %822 = vmatprep.subr.mxu0 %v793
    %823 = vmatpush1.msra.mxu0 %v792
    %824 = vmatprep.subr.mxu0 %v791
    %825 = vmatpush1.msra.mxu0 %v790
    %826 = vmatprep.subr.mxu0 %v789
    %827 = vmatpush1.msra.mxu0 %v788
    %828 = vmatprep.subr.mxu0 %v787
    %829 = vmatpush1.msra.mxu0 %v786
    %830 = vmatprep.subr.mxu0 %v785
    %831 = vmatpush1.msra.mxu0 %v784
    %832 = vmatprep.subr.mxu0 %v783
    %833 = vmatpush1.msra.mxu0 %v782
    %834 = vmatprep.subr.mxu0 %v781
    %835 = vmatpush1.msra.mxu0 %v780
    %836 = vmatprep.subr.mxu0 %v779
    %837 = vmatpush1.msra.mxu0 %v778
    %838 = vmatprep.subr.mxu0 0.0
    %839 = vmatpush2.msra.mxu0 0.0
    %840 = vmatprep.subr.mxu0 0.0
    %841 = vmatpush2.msra.mxu0 0.0
    %842 = vmatprep.subr.mxu0 0.0
    %843 = vmatpush2.msra.mxu0 0.0
    %844 = vmatprep.subr.mxu0 0.0
    %845 = vmatpush2.msra.mxu0 0.0
    %846 = vmatprep.subr.mxu0 0.0
    %847 = vmatpush2.msra.mxu0 0.0
    %848 = vmatprep.subr.mxu0 0.0
    %849 = vmatpush2.msra.mxu0 0.0
    %850 = vmatprep.subr.mxu0 0.0
    %851 = vmatpush2.msra.mxu0 0.0
    %852 = vmatprep.subr.mxu0 0.0
    %853 = vmatpush2.msra.mxu0 0.0
    %854 = vmatprep.subr.mxu0 0.0
    %855 = vmatpush2.msra.mxu0 0.0
    %856 = vmatprep.subr.mxu0 0.0
    %857 = vmatpush2.msra.mxu0 0.0
    %858 = vmatprep.subr.mxu0 0.0
    %859 = vmatpush2.msra.mxu0 0.0
    %860 = vmatprep.subr.mxu0 0.0
    %861 = vmatpush2.msra.mxu0 0.0
    %862 = vmatprep.subr.mxu0 0.0
    %863 = vmatpush2.msra.mxu0 0.0
    %864 = vmatprep.subr.mxu0 0.0
    %865 = vmatpush2.msra.mxu0 0.0
    %866 = vmatprep.subr.mxu0 0.0
    %867 = vmatpush2.msra.mxu0 0.0
    %868 = vmatprep.subr.mxu0 0.0
    %869 = vmatpush2.msra.mxu0 0.0
    %870 = vmatprep.mubr.f32.mxu0 0.0
    %871 = vmatmul.mubr.f32.gmra.mxu0 %v804
    %v872 = vpop.f32.mrf.mxu0
    %v873 = vadd.f32 %v802, %v872
    %v874 = vpop.f32.mrf.mxu0
    %v875 = vadd.f32 %v802, %v874
    %876 = vdwg.mxu0
    %v879 = vcombine.low %v873, %v875
    %v881 = vunpack.c.l.s4 1966171168
    %v882 = vunpack.c.0.s8 %v881
    %v883 = vlaneseq
    %v884 = vshrl.u32 %v883, 7
    %v885 = vsub.s32 %v882, %v884
    %v886 = vrot.slane %v879, %v885
    %v888 = vunpack.c.l.s4 1966171168
    %v889 = vunpack.c.0.s8 %v888
    %v890 = vlaneseq
    %v891 = vshrl.u32 %v890, 7
    %v892 = vsub.s32 %v889, %v891
    %v893 = vrot.slane %v886, %v892
    %v895 = vlaneseq
    %vm896 = vcmp.ge.s32.totalorder %v895, 0
    %vm897 = vcmp.lt.s32.totalorder %v895, 256
    %vm898 = vmand %vm896, %vm897
    %899 = vst.msk [vmem:[#allocation3] sm:$0x3] %vm898, %v893
    // Predicated region
    $region38: #{tpu_custom_call.1} parent=1 // pred_check
      _
    $region39: #{tpu_custom_call.1} parent=1 // pred_check_branch
      %901 = sbr.rel (0) target = $region41
    $region40: #{tpu_custom_call.1} parent=1 // pred_region
      %s903 = ssub.s32 32, 32
      %904 = vsyncadd [#allocation4], %s903
      %s906 = sshll.u32 [#allocation3], 4
      %s907 = int_to_ptr.vmem [resolvable:$true] %s906
      %909 = dma.vmem_to_hbm [thread:$0]  %s907, 32, %s9, [#allocation4]
    $region41: #{tpu_custom_call.1} parent=1 // pred_fallthru
      _
    // Predicated region
    $region42: #{tpu_custom_call.1} parent=1 // pred_check
      _
    $region43: #{tpu_custom_call.1} parent=1 // pred_check_branch
      %911 = sbr.rel (0) target = $region45
    $region44: #{tpu_custom_call.1} parent=1 // pred_region
      %912 = dma.done [#allocation4], 32
    $region45: #{tpu_custom_call.1} parent=1 // pred_fallthru
      _
    %913 = vsyncpa [#allocation4], 1

</llo_original>
